<compile_context>
chip_gen: v6e
topology: v6e:2x2x1
jax: 0.10.0
libtpu: 0.0.40
codegen_flags: <defaults>
</compile_context>

<pallas_src>
import jax
import jax.numpy as jnp
from jax.experimental import pallas as pl
from jax.experimental.pallas import tpu as pltpu  # noqa: F401  (TPU backend)

# Constants from the PyTorch module.
MEAN = (0.16963361, 0.1761256, 0.16955556)
STD = (0.27373913, 0.27497604, 0.27459216)
CROP_TOP = 100
CROP_LEFT = 85
CROP_H = 180
CROP_W = 180

# Folded normalization constants (plain Python floats -> baked into the kernel
# as immediates, zero VMEM / DMA cost).
SCALE = tuple(1.0 / (255.0 * s) for s in STD)       # ToTensor /255 fused with /std
BIAS = tuple(-m / s for m, s in zip(MEAN, STD))     # -mean/std


def _preprocess_kernel(img_ref, out_ref):
    # img_ref: (3, 180, 180) uint8   — cropped, CHW
    # out_ref: (3, 180, 180) float32 — normalized output
    # Static unroll over the 3 channels; per-channel scalar constants feed the
    # VPU directly, cast uint8 -> int32 -> float32 inside the kernel.
    for c in range(3):
        x = img_ref[c, :, :].astype(jnp.int32).astype(jnp.float32)
        out_ref[c, :, :] = x * SCALE[c] + BIAS[c]


@jax.jit
def preprocess(x_hwc_uint8):
    """Equivalent of Preprocess(test=True).forward on an HWC uint8 image."""
    H, W, C = x_hwc_uint8.shape
    assert C == 3, "expected a 3-channel image"
    assert H >= CROP_TOP + CROP_H and W >= CROP_LEFT + CROP_W, "image too small for crop"

    # Crop first, in uint8 (tiny HBM traffic), then HWC -> CHW transpose
    # (ToTensor layout convention). Everything stays uint8 until the kernel.
    crop = jax.lax.slice(
        x_hwc_uint8,
        (CROP_TOP, CROP_LEFT, 0),
        (CROP_TOP + CROP_H, CROP_LEFT + CROP_W, 3),
    )                                                # (180, 180, 3) uint8
    img_chw = jnp.transpose(crop, (2, 0, 1))         # (3, 180, 180) uint8

    # Single-invocation kernel: whole (3,180,180) block is < 0.5 MB even with
    # the f32 output double-buffered, so no tiling / no per-channel grid steps.
    out = pl.pallas_call(
        _preprocess_kernel,
        out_shape=jax.ShapeDtypeStruct((3, CROP_H, CROP_W), jnp.float32),
        grid=(1,),
        in_specs=[pl.BlockSpec((3, CROP_H, CROP_W), lambda i: (0, 0, 0))],
        out_specs=pl.BlockSpec((3, CROP_H, CROP_W), lambda i: (0, 0, 0)),
    )(img_chw)
    return out


def _reference(x_hwc_uint8):
    """Pure-JAX reference of crop -> ToTensor -> Normalize."""
    x = x_hwc_uint8.astype(jnp.float32) / 255.0
    x = jnp.transpose(x, (2, 0, 1))  # CHW
    x = x[:, CROP_TOP:CROP_TOP + CROP_H, CROP_LEFT:CROP_LEFT + CROP_W]
    mean = jnp.asarray(MEAN, dtype=jnp.float32).reshape(3, 1, 1)
    std = jnp.asarray(STD, dtype=jnp.float32).reshape(3, 1, 1)
    return (x - mean) / std


if __name__ == "__main__":
    key = jax.random.PRNGKey(0)
    # Small-but-valid image: must contain the (100, 85, 180, 180) crop window.
    H, W = 300, 272
    x = jax.random.randint(key, (H, W, 3), 0, 256, dtype=jnp.int32).astype(jnp.uint8)

    out = preprocess(x)
    out = jax.block_until_ready(out)

    ref = _reference(x)
    assert out.shape == (3, CROP_H, CROP_W), out.shape
    assert out.dtype == jnp.float32
    assert jnp.allclose(out, ref, atol=1e-5, rtol=1e-5), "mismatch vs reference"

    print("KERNEL_OK")
</pallas_src>

<mosaic_0001>
module attributes {stable_mosaic.version = 11 : i64} {
  func.func @_preprocess_kernel(%arg0: i32, %arg1: memref<3x180x180xi8, #tpu.memory_space<vmem>>, %arg2: memref<3x180x180xf32, #tpu.memory_space<vmem>>) attributes {dimension_semantics = [#tpu.dimension_semantics<arbitrary>], iteration_bounds = array<i64: 1>, scalar_prefetch = 0 : i64, scratch_operands = 0 : i64, tpu.core_type = #tpu.core_type<tc>, window_params = [{pipeline_mode = #tpu.pipeline_mode<synchronous>, transform_indices = @transform_0, window_bounds = array<i64: 3, 180, 180>}, {pipeline_mode = #tpu.pipeline_mode<synchronous>, transform_indices = @transform_1, window_bounds = array<i64: 3, 180, 180>}]} {
    %c0 = arith.constant 0 : index
    %c0_0 = arith.constant 0 : index
    %c0_1 = arith.constant 0 : index
    %0 = vector.load %arg1[%c0, %c0_0, %c0_1] : memref<3x180x180xi8, #tpu.memory_space<vmem>>, vector<1x180x180xi8>
    %1 = vector.shape_cast %0 : vector<1x180x180xi8> to vector<180x180xi8>
    %2 = arith.extui %1 : vector<180x180xi8> to vector<180x180xi32>
    %3 = arith.sitofp %2 : vector<180x180xi32> to vector<180x180xf32>
    %cst = arith.constant 0.0143259335 : f32
    %4 = vector.broadcast %cst : f32 to vector<180x180xf32>
    %5 = arith.mulf %3, %4 : vector<180x180xf32>
    %cst_2 = arith.constant -0.619690776 : f32
    %6 = vector.broadcast %cst_2 : f32 to vector<180x180xf32>
    %7 = arith.addf %5, %6 : vector<180x180xf32>
    %c0_3 = arith.constant 0 : index
    %c0_4 = arith.constant 0 : index
    %c0_5 = arith.constant 0 : index
    %8 = vector.load %arg2[%c0_3, %c0_4, %c0_5] : memref<3x180x180xf32, #tpu.memory_space<vmem>>, vector<1x180x180xf32>
    %9 = vector.shape_cast %8 : vector<1x180x180xf32> to vector<180x180xf32>
    %10 = vector.shape_cast %7 : vector<180x180xf32> to vector<1x180x180xf32>
    tpu.vector_store %arg2[%c0_3, %c0_4, %c0_5], %10 {strides = array<i32>} : memref<3x180x180xf32, #tpu.memory_space<vmem>>, vector<1x180x180xf32>,
    %c1 = arith.constant 1 : index
    %c0_6 = arith.constant 0 : index
    %c0_7 = arith.constant 0 : index
    %11 = vector.load %arg1[%c1, %c0_6, %c0_7] : memref<3x180x180xi8, #tpu.memory_space<vmem>>, vector<1x180x180xi8>
    %12 = vector.shape_cast %11 : vector<1x180x180xi8> to vector<180x180xi8>
    %13 = arith.extui %12 : vector<180x180xi8> to vector<180x180xi32>
    %14 = arith.sitofp %13 : vector<180x180xi32> to vector<180x180xf32>
    %cst_8 = arith.constant 0.0142614925 : f32
    %15 = vector.broadcast %cst_8 : f32 to vector<180x180xf32>
    %16 = arith.mulf %14, %15 : vector<180x180xf32>
    %cst_9 = arith.constant -0.640512526 : f32
    %17 = vector.broadcast %cst_9 : f32 to vector<180x180xf32>
    %18 = arith.addf %16, %17 : vector<180x180xf32>
    %c1_10 = arith.constant 1 : index
    %c0_11 = arith.constant 0 : index
    %c0_12 = arith.constant 0 : index
    %19 = vector.load %arg2[%c1_10, %c0_11, %c0_12] : memref<3x180x180xf32, #tpu.memory_space<vmem>>, vector<1x180x180xf32>
    %20 = vector.shape_cast %19 : vector<1x180x180xf32> to vector<180x180xf32>
    %21 = vector.shape_cast %18 : vector<180x180xf32> to vector<1x180x180xf32>
    tpu.vector_store %arg2[%c1_10, %c0_11, %c0_12], %21 {strides = array<i32>} : memref<3x180x180xf32, #tpu.memory_space<vmem>>, vector<1x180x180xf32>,
    %c2 = arith.constant 2 : index
    %c0_13 = arith.constant 0 : index
    %c0_14 = arith.constant 0 : index
    %22 = vector.load %arg1[%c2, %c0_13, %c0_14] : memref<3x180x180xi8, #tpu.memory_space<vmem>>, vector<1x180x180xi8>
    %23 = vector.shape_cast %22 : vector<1x180x180xi8> to vector<180x180xi8>
    %24 = arith.extui %23 : vector<180x180xi8> to vector<180x180xi32>
    %25 = arith.sitofp %24 : vector<180x180xi32> to vector<180x180xf32>
    %cst_15 = arith.constant 0.0142814294 : f32
    %26 = vector.broadcast %cst_15 : f32 to vector<180x180xf32>
    %27 = arith.mulf %25, %26 : vector<180x180xf32>
    %cst_16 = arith.constant -0.61748141 : f32
    %28 = vector.broadcast %cst_16 : f32 to vector<180x180xf32>
    %29 = arith.addf %27, %28 : vector<180x180xf32>
    %c2_17 = arith.constant 2 : index
    %c0_18 = arith.constant 0 : index
    %c0_19 = arith.constant 0 : index
    %30 = vector.load %arg2[%c2_17, %c0_18, %c0_19] : memref<3x180x180xf32, #tpu.memory_space<vmem>>, vector<1x180x180xf32>
    %31 = vector.shape_cast %30 : vector<1x180x180xf32> to vector<180x180xf32>
    %32 = vector.shape_cast %29 : vector<180x180xf32> to vector<1x180x180xf32>
    tpu.vector_store %arg2[%c2_17, %c0_18, %c0_19], %32 {strides = array<i32>} : memref<3x180x180xf32, #tpu.memory_space<vmem>>, vector<1x180x180xf32>,
    return
  }
  func.func @transform_0(%arg0: i32) -> (i32, i32, i32) {
    %c0_i32 = arith.constant 0 : i32
    %c0_i32_0 = arith.constant 0 : i32
    %c0_i32_1 = arith.constant 0 : i32
    %c0_i32_2 = arith.constant 0 : i32
    return %c0_i32, %c0_i32_0, %c0_i32_1 : i32, i32, i32
  }
  func.func @transform_1(%arg0: i32) -> (i32, i32, i32) {
    %c0_i32 = arith.constant 0 : i32
    %c0_i32_0 = arith.constant 0 : i32
    %c0_i32_1 = arith.constant 0 : i32
    %c0_i32_2 = arith.constant 0 : i32
    return %c0_i32, %c0_i32_0, %c0_i32_1 : i32, i32, i32
  }
}

</mosaic_0001>

<llo_original>
// kernel: preprocess.1
$region0: #{preprocess.1}
  #allocation0 [shape = 'u32[]', space=smem, size = 0x4, offset = 0x4, fixed_abs, tag = 'smem constant byte address 0x4 - core index']
  #allocation1 [shape = 'u32[144,128]{1,0:T(1,128)}', space=vmem, size = 0x12000, scoped, tag = 'internal scratch']
  %s0 = inlined_call_operand.vmem [shape: u8[3,180,180], index: 0, kind: input, shape index: {}]
  %s1 = inlined_call_operand.hbm [shape: f32[3,180,180], index: 1, kind: output, shape index: {}]
  %s2 = sld [smem:[#allocation0]]
  $region14: #{preprocess.1} parent=0
    _
  %s4 = ssub.s32 1, %s2
  %s5 = scalar_select 0, %s4, %s2
  $region1: #{preprocess.1} parent=0
    #allocation2 [shape = 'u8[565248]{0}', space=vmem, size = 0x8a000, scoped, tag = 'output window, operand 0, single buffered']
    #allocation3 [shape = 's32[1]{0}', space=sflag, size = 0x4, scoped, tag = 'scoped memory for preprocess.1']
    %6 = vsyncpa [#allocation3], 0
    // Predicated region
    $region2: #{preprocess.1} parent=1 // pred_check
      _
    $region3: #{preprocess.1} parent=1 // pred_check_branch
      %8 = sbr.rel (0) target = $region5
    $region4: #{preprocess.1} parent=1 // pred_region
      _
    $region5: #{preprocess.1} parent=1 // pred_fallthru
      _
    %v9 = vld [vmem:[%s0] sm:$0xf]
    %v10 = vld [vmem:[%s0 + $0x4] sm:$0xf]
    %v11 = vld [vmem:[%s0 + $0x8] sm:$0xf]
    %v12 = vld [vmem:[%s0 + $0xc] sm:$0xf]
    %v13 = vld [vmem:[%s0 + $0x10] sm:$0xf]
    %v14 = vld [vmem:[%s0 + $0x14] sm:$0xf]
    %v15 = vld [vmem:[%s0 + $0x18] sm:$0xf]
    %v16 = vld [vmem:[%s0 + $0x1c] sm:$0xf]
    %v17 = vld [vmem:[%s0 + $0x20] sm:$0xf]
    %v18 = vld [vmem:[%s0 + $0x24] sm:$0xf]
    %v19 = vld [vmem:[%s0 + $0x28] sm:$0xf]
    %v20 = vld [vmem:[%s0 + $0x2c] sm:$0xf]
    %v21 = vld [vmem:[%s0 + $0x30] sm:$0xf]
    %v22 = vld [vmem:[%s0 + $0x34] sm:$0xf]
    %v23 = vld [vmem:[%s0 + $0x38] sm:$0xf]
    %v24 = vld [vmem:[%s0 + $0x3c] sm:$0xf]
    %v25 = vld [vmem:[%s0 + $0x40] sm:$0xf]
    %v26 = vld [vmem:[%s0 + $0x44] sm:$0xf]
    %v27 = vld [vmem:[%s0 + $0x48] sm:$0xf]
    %v28 = vld [vmem:[%s0 + $0x4c] sm:$0xf]
    %v29 = vld [vmem:[%s0 + $0x50] sm:$0xf]
    %v30 = vld [vmem:[%s0 + $0x54] sm:$0xf]
    %v31 = vld [vmem:[%s0 + $0x58] sm:$0x5]
    %v32 = vunpack.c.0.s8 %v9
    %v33 = vunpack.c.1.s8 %v9
    %v34 = vunpack.c.0.s8 %v10
    %v35 = vunpack.c.1.s8 %v10
    %v36 = vunpack.c.0.s8 %v11
    %v37 = vunpack.c.1.s8 %v11
    %v38 = vunpack.c.0.s8 %v12
    %v39 = vunpack.c.1.s8 %v12
    %v40 = vunpack.c.0.s8 %v13
    %v41 = vunpack.c.1.s8 %v13
    %v42 = vunpack.c.0.s8 %v14
    %v43 = vunpack.c.1.s8 %v14
    %v44 = vunpack.c.0.s8 %v15
    %v45 = vunpack.c.1.s8 %v15
    %v46 = vunpack.c.0.s8 %v16
    %v47 = vunpack.c.1.s8 %v16
    %v48 = vunpack.c.0.s8 %v17
    %v49 = vunpack.c.1.s8 %v17
    %v50 = vunpack.c.0.s8 %v18
    %v51 = vunpack.c.1.s8 %v18
    %v52 = vunpack.c.0.s8 %v19
    %v53 = vunpack.c.1.s8 %v19
    %v54 = vunpack.c.0.s8 %v20
    %v55 = vunpack.c.1.s8 %v20
    %v56 = vunpack.c.0.s8 %v21
    %v57 = vunpack.c.1.s8 %v21
    %v58 = vunpack.c.0.s8 %v22
    %v59 = vunpack.c.1.s8 %v22
    %v60 = vunpack.c.0.s8 %v23
    %v61 = vunpack.c.1.s8 %v23
    %v62 = vunpack.c.0.s8 %v24
    %v63 = vunpack.c.1.s8 %v24
    %v64 = vunpack.c.0.s8 %v25
    %v65 = vunpack.c.1.s8 %v25
    %v66 = vunpack.c.0.s8 %v26
    %v67 = vunpack.c.1.s8 %v26
    %v68 = vunpack.c.0.s8 %v27
    %v69 = vunpack.c.1.s8 %v27
    %v70 = vunpack.c.0.s8 %v28
    %v71 = vunpack.c.1.s8 %v28
    %v72 = vunpack.c.0.s8 %v29
    %v73 = vunpack.c.1.s8 %v29
    %v74 = vunpack.c.0.s8 %v30
    %v75 = vunpack.c.1.s8 %v30
    %v76 = vunpack.c.0.s8 %v31
    %v77 = vunpack.c.1.s8 %v31
    %v78 = vand.u32 %v32, 255
    %v79 = vand.u32 %v33, 255
    %v80 = vand.u32 %v34, 255
    %v81 = vand.u32 %v35, 255
    %v82 = vand.u32 %v36, 255
    %v83 = vand.u32 %v37, 255
    %v84 = vand.u32 %v38, 255
    %v85 = vand.u32 %v39, 255
    %v86 = vand.u32 %v40, 255
    %v87 = vand.u32 %v41, 255
    %v88 = vand.u32 %v42, 255
    %v89 = vand.u32 %v43, 255
    %v90 = vand.u32 %v44, 255
    %v91 = vand.u32 %v45, 255
    %v92 = vand.u32 %v46, 255
    %v93 = vand.u32 %v47, 255
    %v94 = vand.u32 %v48, 255
    %v95 = vand.u32 %v49, 255
    %v96 = vand.u32 %v50, 255
    %v97 = vand.u32 %v51, 255
    %v98 = vand.u32 %v52, 255
    %v99 = vand.u32 %v53, 255
    %v100 = vand.u32 %v54, 255
    %v101 = vand.u32 %v55, 255
    %v102 = vand.u32 %v56, 255
    %v103 = vand.u32 %v57, 255
    %v104 = vand.u32 %v58, 255
    %v105 = vand.u32 %v59, 255
    %v106 = vand.u32 %v60, 255
    %v107 = vand.u32 %v61, 255
    %v108 = vand.u32 %v62, 255
    %v109 = vand.u32 %v63, 255
    %v110 = vand.u32 %v64, 255
    %v111 = vand.u32 %v65, 255
    %v112 = vand.u32 %v66, 255
    %v113 = vand.u32 %v67, 255
    %v114 = vand.u32 %v68, 255
    %v115 = vand.u32 %v69, 255
    %v116 = vand.u32 %v70, 255
    %v117 = vand.u32 %v71, 255
    %v118 = vand.u32 %v72, 255
    %v119 = vand.u32 %v73, 255
    %v120 = vand.u32 %v74, 255
    %v121 = vand.u32 %v75, 255
    %v122 = vand.u32 %v76, 255
    %v123 = vand.u32 %v77, 255
    %v124 = vcvt.s32.f32 %v78
    %v125 = vcvt.s32.f32 %v79
    %v126 = vcvt.s32.f32 %v80
    %v127 = vcvt.s32.f32 %v81
    %v128 = vcvt.s32.f32 %v82
    %v129 = vcvt.s32.f32 %v83
    %v130 = vcvt.s32.f32 %v84
    %v131 = vcvt.s32.f32 %v85
    %v132 = vcvt.s32.f32 %v86
    %v133 = vcvt.s32.f32 %v87
    %v134 = vcvt.s32.f32 %v88
    %v135 = vcvt.s32.f32 %v89
    %v136 = vcvt.s32.f32 %v90
    %v137 = vcvt.s32.f32 %v91
    %v138 = vcvt.s32.f32 %v92
    %v139 = vcvt.s32.f32 %v93
    %v140 = vcvt.s32.f32 %v94
    %v141 = vcvt.s32.f32 %v95
    %v142 = vcvt.s32.f32 %v96
    %v143 = vcvt.s32.f32 %v97
    %v144 = vcvt.s32.f32 %v98
    %v145 = vcvt.s32.f32 %v99
    %v146 = vcvt.s32.f32 %v100
    %v147 = vcvt.s32.f32 %v101
    %v148 = vcvt.s32.f32 %v102
    %v149 = vcvt.s32.f32 %v103
    %v150 = vcvt.s32.f32 %v104
    %v151 = vcvt.s32.f32 %v105
    %v152 = vcvt.s32.f32 %v106
    %v153 = vcvt.s32.f32 %v107
    %v154 = vcvt.s32.f32 %v108
    %v155 = vcvt.s32.f32 %v109
    %v156 = vcvt.s32.f32 %v110
    %v157 = vcvt.s32.f32 %v111
    %v158 = vcvt.s32.f32 %v112
    %v159 = vcvt.s32.f32 %v113
    %v160 = vcvt.s32.f32 %v114
    %v161 = vcvt.s32.f32 %v115
    %v162 = vcvt.s32.f32 %v116
    %v163 = vcvt.s32.f32 %v117
    %v164 = vcvt.s32.f32 %v118
    %v165 = vcvt.s32.f32 %v119
    %v166 = vcvt.s32.f32 %v120
    %v167 = vcvt.s32.f32 %v121
    %v168 = vcvt.s32.f32 %v122
    %v169 = vcvt.s32.f32 %v123
    %v170 = vmul.f32 %v124, 0.0143259335
    %v171 = vmul.f32 %v125, 0.0143259335
    %v172 = vmul.f32 %v126, 0.0143259335
    %v173 = vmul.f32 %v127, 0.0143259335
    %v174 = vmul.f32 %v128, 0.0143259335
    %v175 = vmul.f32 %v129, 0.0143259335
    %v176 = vmul.f32 %v130, 0.0143259335
    %v177 = vmul.f32 %v131, 0.0143259335
    %v178 = vmul.f32 %v132, 0.0143259335
    %v179 = vmul.f32 %v133, 0.0143259335
    %v180 = vmul.f32 %v134, 0.0143259335
    %v181 = vmul.f32 %v135, 0.0143259335
    %v182 = vmul.f32 %v136, 0.0143259335
    %v183 = vmul.f32 %v137, 0.0143259335
    %v184 = vmul.f32 %v138, 0.0143259335
    %v185 = vmul.f32 %v139, 0.0143259335
    %v186 = vmul.f32 %v140, 0.0143259335
    %v187 = vmul.f32 %v141, 0.0143259335
    %v188 = vmul.f32 %v142, 0.0143259335
    %v189 = vmul.f32 %v143, 0.0143259335
    %v190 = vmul.f32 %v144, 0.0143259335
    %v191 = vmul.f32 %v145, 0.0143259335
    %v192 = vmul.f32 %v146, 0.0143259335
    %v193 = vmul.f32 %v147, 0.0143259335
    %v194 = vmul.f32 %v148, 0.0143259335
    %v195 = vmul.f32 %v149, 0.0143259335
    %v196 = vmul.f32 %v150, 0.0143259335
    %v197 = vmul.f32 %v151, 0.0143259335
    %v198 = vmul.f32 %v152, 0.0143259335
    %v199 = vmul.f32 %v153, 0.0143259335
    %v200 = vmul.f32 %v154, 0.0143259335
    %v201 = vmul.f32 %v155, 0.0143259335
    %v202 = vmul.f32 %v156, 0.0143259335
    %v203 = vmul.f32 %v157, 0.0143259335
    %v204 = vmul.f32 %v158, 0.0143259335
    %v205 = vmul.f32 %v159, 0.0143259335
    %v206 = vmul.f32 %v160, 0.0143259335
    %v207 = vmul.f32 %v161, 0.0143259335
    %v208 = vmul.f32 %v162, 0.0143259335
    %v209 = vmul.f32 %v163, 0.0143259335
    %v210 = vmul.f32 %v164, 0.0143259335
    %v211 = vmul.f32 %v165, 0.0143259335
    %v212 = vmul.f32 %v166, 0.0143259335
    %v213 = vmul.f32 %v167, 0.0143259335
    %v214 = vmul.f32 %v168, 0.0143259335
    %v215 = vmul.f32 %v169, 0.0143259335
    %v216 = vadd.f32 %v170, -0.6196908
    %v217 = vadd.f32 %v171, -0.6196908
    %v218 = vadd.f32 %v172, -0.6196908
    %v219 = vadd.f32 %v173, -0.6196908
    %v220 = vadd.f32 %v174, -0.6196908
    %v221 = vadd.f32 %v175, -0.6196908
    %v222 = vadd.f32 %v176, -0.6196908
    %v223 = vadd.f32 %v177, -0.6196908
    %v224 = vadd.f32 %v178, -0.6196908
    %v225 = vadd.f32 %v179, -0.6196908
    %v226 = vadd.f32 %v180, -0.6196908
    %v227 = vadd.f32 %v181, -0.6196908
    %v228 = vadd.f32 %v182, -0.6196908
    %v229 = vadd.f32 %v183, -0.6196908
    %v230 = vadd.f32 %v184, -0.6196908
    %v231 = vadd.f32 %v185, -0.6196908
    %v232 = vadd.f32 %v186, -0.6196908
    %v233 = vadd.f32 %v187, -0.6196908
    %v234 = vadd.f32 %v188, -0.6196908
    %v235 = vadd.f32 %v189, -0.6196908
    %v236 = vadd.f32 %v190, -0.6196908
    %v237 = vadd.f32 %v191, -0.6196908
    %v238 = vadd.f32 %v192, -0.6196908
    %v239 = vadd.f32 %v193, -0.6196908
    %v240 = vadd.f32 %v194, -0.6196908
    %v241 = vadd.f32 %v195, -0.6196908
    %v242 = vadd.f32 %v196, -0.6196908
    %v243 = vadd.f32 %v197, -0.6196908
    %v244 = vadd.f32 %v198, -0.6196908
    %v245 = vadd.f32 %v199, -0.6196908
    %v246 = vadd.f32 %v200, -0.6196908
    %v247 = vadd.f32 %v201, -0.6196908
    %v248 = vadd.f32 %v202, -0.6196908
    %v249 = vadd.f32 %v203, -0.6196908
    %v250 = vadd.f32 %v204, -0.6196908
    %v251 = vadd.f32 %v205, -0.6196908
    %v252 = vadd.f32 %v206, -0.6196908
    %v253 = vadd.f32 %v207, -0.6196908
    %v254 = vadd.f32 %v208, -0.6196908
    %v255 = vadd.f32 %v209, -0.6196908
    %v256 = vadd.f32 %v210, -0.6196908
    %v257 = vadd.f32 %v211, -0.6196908
    %v258 = vadd.f32 %v212, -0.6196908
    %v259 = vadd.f32 %v213, -0.6196908
    %v260 = vadd.f32 %v214, -0.6196908
    %v261 = vadd.f32 %v215, -0.6196908
    %262 = vst [vmem:[#allocation2] sm:$0xff] %v216
    %vm263 = vcmask 424960
    %264 = vst.msk [vmem:[#allocation2 + $0x8] sm:$0xff] %vm263, %v217
    %265 = vst [vmem:[#allocation2 + $0x10] sm:$0xff] %v218
    %266 = vst.msk [vmem:[#allocation2 + $0x18] sm:$0xff] %vm263, %v219
    %267 = vst [vmem:[#allocation2 + $0x20] sm:$0xff] %v220
    %268 = vst.msk [vmem:[#allocation2 + $0x28] sm:$0xff] %vm263, %v221
    %269 = vst [vmem:[#allocation2 + $0x30] sm:$0xff] %v222
    %270 = vst.msk [vmem:[#allocation2 + $0x38] sm:$0xff] %vm263, %v223
    %271 = vst [vmem:[#allocation2 + $0x40] sm:$0xff] %v224
    %272 = vst.msk [vmem:[#allocation2 + $0x48] sm:$0xff] %vm263, %v225
    %273 = vst [vmem:[#allocation2 + $0x50] sm:$0xff] %v226
    %274 = vst.msk [vmem:[#allocation2 + $0x58] sm:$0xff] %vm263, %v227
    %275 = vst [vmem:[#allocation2 + $0x60] sm:$0xff] %v228
    %276 = vst.msk [vmem:[#allocation2 + $0x68] sm:$0xff] %vm263, %v229
    %277 = vst [vmem:[#allocation2 + $0x70] sm:$0xff] %v230
    %278 = vst.msk [vmem:[#allocation2 + $0x78] sm:$0xff] %vm263, %v231
    %279 = vst [vmem:[#allocation2 + $0x80] sm:$0xff] %v232
    %280 = vst.msk [vmem:[#allocation2 + $0x88] sm:$0xff] %vm263, %v233
    %281 = vst [vmem:[#allocation2 + $0x90] sm:$0xff] %v234
    %282 = vst.msk [vmem:[#allocation2 + $0x98] sm:$0xff] %vm263, %v235
    %283 = vst [vmem:[#allocation2 + $0xa0] sm:$0xff] %v236
    %284 = vst.msk [vmem:[#allocation2 + $0xa8] sm:$0xff] %vm263, %v237
    %285 = vst [vmem:[#allocation2 + $0xb0] sm:$0xff] %v238
    %286 = vst.msk [vmem:[#allocation2 + $0xb8] sm:$0xff] %vm263, %v239
    %287 = vst [vmem:[#allocation2 + $0xc0] sm:$0xff] %v240
    %288 = vst.msk [vmem:[#allocation2 + $0xc8] sm:$0xff] %vm263, %v241
    %289 = vst [vmem:[#allocation2 + $0xd0] sm:$0xff] %v242
    %290 = vst.msk [vmem:[#allocation2 + $0xd8] sm:$0xff] %vm263, %v243
    %291 = vst [vmem:[#allocation2 + $0xe0] sm:$0xff] %v244
    %292 = vst.msk [vmem:[#allocation2 + $0xe8] sm:$0xff] %vm263, %v245
    %293 = vst [vmem:[#allocation2 + $0xf0] sm:$0xff] %v246
    %294 = vst.msk [vmem:[#allocation2 + $0xf8] sm:$0xff] %vm263, %v247
    %295 = vst [vmem:[#allocation2 + $0x100] sm:$0xff] %v248
    %296 = vst.msk [vmem:[#allocation2 + $0x108] sm:$0xff] %vm263, %v249
    %297 = vst [vmem:[#allocation2 + $0x110] sm:$0xff] %v250
    %298 = vst.msk [vmem:[#allocation2 + $0x118] sm:$0xff] %vm263, %v251
    %299 = vst [vmem:[#allocation2 + $0x120] sm:$0xff] %v252
    %300 = vst.msk [vmem:[#allocation2 + $0x128] sm:$0xff] %vm263, %v253
    %301 = vst [vmem:[#allocation2 + $0x130] sm:$0xff] %v254
    %302 = vst.msk [vmem:[#allocation2 + $0x138] sm:$0xff] %vm263, %v255
    %303 = vst [vmem:[#allocation2 + $0x140] sm:$0xff] %v256
    %304 = vst.msk [vmem:[#allocation2 + $0x148] sm:$0xff] %vm263, %v257
    %305 = vst [vmem:[#allocation2 + $0x150] sm:$0xff] %v258
    %306 = vst.msk [vmem:[#allocation2 + $0x158] sm:$0xff] %vm263, %v259
    %307 = vst [vmem:[#allocation2 + $0x160] sm:$0xf] %v260
    %vm308 = vcmask 420864
    %309 = vst.msk [vmem:[#allocation2 + $0x168] sm:$0xf] %vm308, %v261
    %s310 = scalar_lea.vmem %s0, 92
    %v311 = vld [vmem:[%s310] sm:$0xf]
    %v312 = vld [vmem:[%s310 + $0x4] sm:$0xf]
    %v313 = vld [vmem:[%s310 + $0x8] sm:$0xf]
    %v314 = vld [vmem:[%s310 + $0xc] sm:$0xf]
    %v315 = vld [vmem:[%s310 + $0x10] sm:$0xf]
    %v316 = vld [vmem:[%s310 + $0x14] sm:$0xf]
    %v317 = vld [vmem:[%s310 + $0x18] sm:$0xf]
    %v318 = vld [vmem:[%s310 + $0x1c] sm:$0xf]
    %v319 = vld [vmem:[%s310 + $0x20] sm:$0xf]
    %v320 = vld [vmem:[%s310 + $0x24] sm:$0xf]
    %v321 = vld [vmem:[%s310 + $0x28] sm:$0xf]
    %v322 = vld [vmem:[%s310 + $0x2c] sm:$0xf]
    %v323 = vld [vmem:[%s310 + $0x30] sm:$0xf]
    %v324 = vld [vmem:[%s310 + $0x34] sm:$0xf]
    %v325 = vld [vmem:[%s310 + $0x38] sm:$0xf]
    %v326 = vld [vmem:[%s310 + $0x3c] sm:$0xf]
    %v327 = vld [vmem:[%s310 + $0x40] sm:$0xf]
    %v328 = vld [vmem:[%s310 + $0x44] sm:$0xf]
    %v329 = vld [vmem:[%s310 + $0x48] sm:$0xf]
    %v330 = vld [vmem:[%s310 + $0x4c] sm:$0xf]
    %v331 = vld [vmem:[%s310 + $0x50] sm:$0xf]
    %v332 = vld [vmem:[%s310 + $0x54] sm:$0xf]
    %v333 = vld [vmem:[%s310 + $0x58] sm:$0x5]
    %v334 = vunpack.c.0.s8 %v311
    %v335 = vunpack.c.1.s8 %v311
    %v336 = vunpack.c.0.s8 %v312
    %v337 = vunpack.c.1.s8 %v312
    %v338 = vunpack.c.0.s8 %v313
    %v339 = vunpack.c.1.s8 %v313
    %v340 = vunpack.c.0.s8 %v314
    %v341 = vunpack.c.1.s8 %v314
    %v342 = vunpack.c.0.s8 %v315
    %v343 = vunpack.c.1.s8 %v315
    %v344 = vunpack.c.0.s8 %v316
    %v345 = vunpack.c.1.s8 %v316
    %v346 = vunpack.c.0.s8 %v317
    %v347 = vunpack.c.1.s8 %v317
    %v348 = vunpack.c.0.s8 %v318
    %v349 = vunpack.c.1.s8 %v318
    %v350 = vunpack.c.0.s8 %v319
    %v351 = vunpack.c.1.s8 %v319
    %v352 = vunpack.c.0.s8 %v320
    %v353 = vunpack.c.1.s8 %v320
    %v354 = vunpack.c.0.s8 %v321
    %v355 = vunpack.c.1.s8 %v321
    %v356 = vunpack.c.0.s8 %v322
    %v357 = vunpack.c.1.s8 %v322
    %v358 = vunpack.c.0.s8 %v323
    %v359 = vunpack.c.1.s8 %v323
    %v360 = vunpack.c.0.s8 %v324
    %v361 = vunpack.c.1.s8 %v324
    %v362 = vunpack.c.0.s8 %v325
    %v363 = vunpack.c.1.s8 %v325
    %v364 = vunpack.c.0.s8 %v326
    %v365 = vunpack.c.1.s8 %v326
    %v366 = vunpack.c.0.s8 %v327
    %v367 = vunpack.c.1.s8 %v327
    %v368 = vunpack.c.0.s8 %v328
    %v369 = vunpack.c.1.s8 %v328
    %v370 = vunpack.c.0.s8 %v329
    %v371 = vunpack.c.1.s8 %v329
    %v372 = vunpack.c.0.s8 %v330
    %v373 = vunpack.c.1.s8 %v330
    %v374 = vunpack.c.0.s8 %v331
    %v375 = vunpack.c.1.s8 %v331
    %v376 = vunpack.c.0.s8 %v332
    %v377 = vunpack.c.1.s8 %v332
    %v378 = vunpack.c.0.s8 %v333
    %v379 = vunpack.c.1.s8 %v333
    %v380 = vand.u32 %v334, 255
    %v381 = vand.u32 %v335, 255
    %v382 = vand.u32 %v336, 255
    %v383 = vand.u32 %v337, 255
    %v384 = vand.u32 %v338, 255
    %v385 = vand.u32 %v339, 255
    %v386 = vand.u32 %v340, 255
    %v387 = vand.u32 %v341, 255
    %v388 = vand.u32 %v342, 255
    %v389 = vand.u32 %v343, 255
    %v390 = vand.u32 %v344, 255
    %v391 = vand.u32 %v345, 255
    %v392 = vand.u32 %v346, 255
    %v393 = vand.u32 %v347, 255
    %v394 = vand.u32 %v348, 255
    %v395 = vand.u32 %v349, 255
    %v396 = vand.u32 %v350, 255
    %v397 = vand.u32 %v351, 255
    %v398 = vand.u32 %v352, 255
    %v399 = vand.u32 %v353, 255
    %v400 = vand.u32 %v354, 255
    %v401 = vand.u32 %v355, 255
    %v402 = vand.u32 %v356, 255
    %v403 = vand.u32 %v357, 255
    %v404 = vand.u32 %v358, 255
    %v405 = vand.u32 %v359, 255
    %v406 = vand.u32 %v360, 255
    %v407 = vand.u32 %v361, 255
    %v408 = vand.u32 %v362, 255
    %v409 = vand.u32 %v363, 255
    %v410 = vand.u32 %v364, 255
    %v411 = vand.u32 %v365, 255
    %v412 = vand.u32 %v366, 255
    %v413 = vand.u32 %v367, 255
    %v414 = vand.u32 %v368, 255
    %v415 = vand.u32 %v369, 255
    %v416 = vand.u32 %v370, 255
    %v417 = vand.u32 %v371, 255
    %v418 = vand.u32 %v372, 255
    %v419 = vand.u32 %v373, 255
    %v420 = vand.u32 %v374, 255
    %v421 = vand.u32 %v375, 255
    %v422 = vand.u32 %v376, 255
    %v423 = vand.u32 %v377, 255
    %v424 = vand.u32 %v378, 255
    %v425 = vand.u32 %v379, 255
    %v426 = vcvt.s32.f32 %v380
    %v427 = vcvt.s32.f32 %v381
    %v428 = vcvt.s32.f32 %v382
    %v429 = vcvt.s32.f32 %v383
    %v430 = vcvt.s32.f32 %v384
    %v431 = vcvt.s32.f32 %v385
    %v432 = vcvt.s32.f32 %v386
    %v433 = vcvt.s32.f32 %v387
    %v434 = vcvt.s32.f32 %v388
    %v435 = vcvt.s32.f32 %v389
    %v436 = vcvt.s32.f32 %v390
    %v437 = vcvt.s32.f32 %v391
    %v438 = vcvt.s32.f32 %v392
    %v439 = vcvt.s32.f32 %v393
    %v440 = vcvt.s32.f32 %v394
    %v441 = vcvt.s32.f32 %v395
    %v442 = vcvt.s32.f32 %v396
    %v443 = vcvt.s32.f32 %v397
    %v444 = vcvt.s32.f32 %v398
    %v445 = vcvt.s32.f32 %v399
    %v446 = vcvt.s32.f32 %v400
    %v447 = vcvt.s32.f32 %v401
    %v448 = vcvt.s32.f32 %v402
    %v449 = vcvt.s32.f32 %v403
    %v450 = vcvt.s32.f32 %v404
    %v451 = vcvt.s32.f32 %v405
    %v452 = vcvt.s32.f32 %v406
    %v453 = vcvt.s32.f32 %v407
    %v454 = vcvt.s32.f32 %v408
    %v455 = vcvt.s32.f32 %v409
    %v456 = vcvt.s32.f32 %v410
    %v457 = vcvt.s32.f32 %v411
    %v458 = vcvt.s32.f32 %v412
    %v459 = vcvt.s32.f32 %v413
    %v460 = vcvt.s32.f32 %v414
    %v461 = vcvt.s32.f32 %v415
    %v462 = vcvt.s32.f32 %v416
    %v463 = vcvt.s32.f32 %v417
    %v464 = vcvt.s32.f32 %v418
    %v465 = vcvt.s32.f32 %v419
    %v466 = vcvt.s32.f32 %v420
    %v467 = vcvt.s32.f32 %v421
    %v468 = vcvt.s32.f32 %v422
    %v469 = vcvt.s32.f32 %v423
    %v470 = vcvt.s32.f32 %v424
    %v471 = vcvt.s32.f32 %v425
    %v472 = vmul.f32 %v426, 0.0142614925
    %v473 = vmul.f32 %v427, 0.0142614925
    %v474 = vmul.f32 %v428, 0.0142614925
    %v475 = vmul.f32 %v429, 0.0142614925
    %v476 = vmul.f32 %v430, 0.0142614925
    %v477 = vmul.f32 %v431, 0.0142614925
    %v478 = vmul.f32 %v432, 0.0142614925
    %v479 = vmul.f32 %v433, 0.0142614925
    %v480 = vmul.f32 %v434, 0.0142614925
    %v481 = vmul.f32 %v435, 0.0142614925
    %v482 = vmul.f32 %v436, 0.0142614925
    %v483 = vmul.f32 %v437, 0.0142614925
    %v484 = vmul.f32 %v438, 0.0142614925
    %v485 = vmul.f32 %v439, 0.0142614925
    %v486 = vmul.f32 %v440, 0.0142614925
    %v487 = vmul.f32 %v441, 0.0142614925
    %v488 = vmul.f32 %v442, 0.0142614925
    %v489 = vmul.f32 %v443, 0.0142614925
    %v490 = vmul.f32 %v444, 0.0142614925
    %v491 = vmul.f32 %v445, 0.0142614925
    %v492 = vmul.f32 %v446, 0.0142614925
    %v493 = vmul.f32 %v447, 0.0142614925
    %v494 = vmul.f32 %v448, 0.0142614925
    %v495 = vmul.f32 %v449, 0.0142614925
    %v496 = vmul.f32 %v450, 0.0142614925
    %v497 = vmul.f32 %v451, 0.0142614925
    %v498 = vmul.f32 %v452, 0.0142614925
    %v499 = vmul.f32 %v453, 0.0142614925
    %v500 = vmul.f32 %v454, 0.0142614925
    %v501 = vmul.f32 %v455, 0.0142614925
    %v502 = vmul.f32 %v456, 0.0142614925
    %v503 = vmul.f32 %v457, 0.0142614925
    %v504 = vmul.f32 %v458, 0.0142614925
    %v505 = vmul.f32 %v459, 0.0142614925
    %v506 = vmul.f32 %v460, 0.0142614925
    %v507 = vmul.f32 %v461, 0.0142614925
    %v508 = vmul.f32 %v462, 0.0142614925
    %v509 = vmul.f32 %v463, 0.0142614925
    %v510 = vmul.f32 %v464, 0.0142614925
    %v511 = vmul.f32 %v465, 0.0142614925
    %v512 = vmul.f32 %v466, 0.0142614925
    %v513 = vmul.f32 %v467, 0.0142614925
    %v514 = vmul.f32 %v468, 0.0142614925
    %v515 = vmul.f32 %v469, 0.0142614925
    %v516 = vmul.f32 %v470, 0.0142614925
    %v517 = vmul.f32 %v471, 0.0142614925
    %v518 = vadd.f32 %v472, -0.6405125
    %v519 = vadd.f32 %v473, -0.6405125
    %v520 = vadd.f32 %v474, -0.6405125
    %v521 = vadd.f32 %v475, -0.6405125
    %v522 = vadd.f32 %v476, -0.6405125
    %v523 = vadd.f32 %v477, -0.6405125
    %v524 = vadd.f32 %v478, -0.6405125
    %v525 = vadd.f32 %v479, -0.6405125
    %v526 = vadd.f32 %v480, -0.6405125
    %v527 = vadd.f32 %v481, -0.6405125
    %v528 = vadd.f32 %v482, -0.6405125
    %v529 = vadd.f32 %v483, -0.6405125
    %v530 = vadd.f32 %v484, -0.6405125
    %v531 = vadd.f32 %v485, -0.6405125
    %v532 = vadd.f32 %v486, -0.6405125
    %v533 = vadd.f32 %v487, -0.6405125
    %v534 = vadd.f32 %v488, -0.6405125
    %v535 = vadd.f32 %v489, -0.6405125
    %v536 = vadd.f32 %v490, -0.6405125
    %v537 = vadd.f32 %v491, -0.6405125
    %v538 = vadd.f32 %v492, -0.6405125
    %v539 = vadd.f32 %v493, -0.6405125
    %v540 = vadd.f32 %v494, -0.6405125
    %v541 = vadd.f32 %v495, -0.6405125
    %v542 = vadd.f32 %v496, -0.6405125
    %v543 = vadd.f32 %v497, -0.6405125
    %v544 = vadd.f32 %v498, -0.6405125
    %v545 = vadd.f32 %v499, -0.6405125
    %v546 = vadd.f32 %v500, -0.6405125
    %v547 = vadd.f32 %v501, -0.6405125
    %v548 = vadd.f32 %v502, -0.6405125
    %v549 = vadd.f32 %v503, -0.6405125
    %v550 = vadd.f32 %v504, -0.6405125
    %v551 = vadd.f32 %v505, -0.6405125
    %v552 = vadd.f32 %v506, -0.6405125
    %v553 = vadd.f32 %v507, -0.6405125
    %v554 = vadd.f32 %v508, -0.6405125
    %v555 = vadd.f32 %v509, -0.6405125
    %v556 = vadd.f32 %v510, -0.6405125
    %v557 = vadd.f32 %v511, -0.6405125
    %v558 = vadd.f32 %v512, -0.6405125
    %v559 = vadd.f32 %v513, -0.6405125
    %v560 = vadd.f32 %v514, -0.6405125
    %v561 = vadd.f32 %v515, -0.6405125
    %v562 = vadd.f32 %v516, -0.6405125
    %v563 = vadd.f32 %v517, -0.6405125
    %s564 = scalar_lea.vmem [#allocation2], 368
    %565 = vst [vmem:[%s564] sm:$0xff] %v518
    %566 = vst.msk [vmem:[%s564 + $0x8] sm:$0xff] %vm263, %v519
    %567 = vst [vmem:[%s564 + $0x10] sm:$0xff] %v520
    %568 = vst.msk [vmem:[%s564 + $0x18] sm:$0xff] %vm263, %v521
    %569 = vst [vmem:[%s564 + $0x20] sm:$0xff] %v522
    %570 = vst.msk [vmem:[%s564 + $0x28] sm:$0xff] %vm263, %v523
    %571 = vst [vmem:[%s564 + $0x30] sm:$0xff] %v524
    %572 = vst.msk [vmem:[%s564 + $0x38] sm:$0xff] %vm263, %v525
    %573 = vst [vmem:[%s564 + $0x40] sm:$0xff] %v526
    %574 = vst.msk [vmem:[%s564 + $0x48] sm:$0xff] %vm263, %v527
    %575 = vst [vmem:[%s564 + $0x50] sm:$0xff] %v528
    %576 = vst.msk [vmem:[%s564 + $0x58] sm:$0xff] %vm263, %v529
    %577 = vst [vmem:[%s564 + $0x60] sm:$0xff] %v530
    %578 = vst.msk [vmem:[%s564 + $0x68] sm:$0xff] %vm263, %v531
    %579 = vst [vmem:[%s564 + $0x70] sm:$0xff] %v532
    %580 = vst.msk [vmem:[%s564 + $0x78] sm:$0xff] %vm263, %v533
    %581 = vst [vmem:[%s564 + $0x80] sm:$0xff] %v534
    %582 = vst.msk [vmem:[%s564 + $0x88] sm:$0xff] %vm263, %v535
    %583 = vst [vmem:[%s564 + $0x90] sm:$0xff] %v536
    %584 = vst.msk [vmem:[%s564 + $0x98] sm:$0xff] %vm263, %v537
    %585 = vst [vmem:[%s564 + $0xa0] sm:$0xff] %v538
    %586 = vst.msk [vmem:[%s564 + $0xa8] sm:$0xff] %vm263, %v539
    %587 = vst [vmem:[%s564 + $0xb0] sm:$0xff] %v540
    %588 = vst.msk [vmem:[%s564 + $0xb8] sm:$0xff] %vm263, %v541
    %589 = vst [vmem:[%s564 + $0xc0] sm:$0xff] %v542
    %590 = vst.msk [vmem:[%s564 + $0xc8] sm:$0xff] %vm263, %v543
    %591 = vst [vmem:[%s564 + $0xd0] sm:$0xff] %v544
    %592 = vst.msk [vmem:[%s564 + $0xd8] sm:$0xff] %vm263, %v545
    %593 = vst [vmem:[%s564 + $0xe0] sm:$0xff] %v546
    %594 = vst.msk [vmem:[%s564 + $0xe8] sm:$0xff] %vm263, %v547
    %595 = vst [vmem:[%s564 + $0xf0] sm:$0xff] %v548
    %596 = vst.msk [vmem:[%s564 + $0xf8] sm:$0xff] %vm263, %v549
    %597 = vst [vmem:[%s564 + $0x100] sm:$0xff] %v550
    %598 = vst.msk [vmem:[%s564 + $0x108] sm:$0xff] %vm263, %v551
    %599 = vst [vmem:[%s564 + $0x110] sm:$0xff] %v552
    %600 = vst.msk [vmem:[%s564 + $0x118] sm:$0xff] %vm263, %v553
    %601 = vst [vmem:[%s564 + $0x120] sm:$0xff] %v554
    %602 = vst.msk [vmem:[%s564 + $0x128] sm:$0xff] %vm263, %v555
    %603 = vst [vmem:[%s564 + $0x130] sm:$0xff] %v556
    %604 = vst.msk [vmem:[%s564 + $0x138] sm:$0xff] %vm263, %v557
    %605 = vst [vmem:[%s564 + $0x140] sm:$0xff] %v558
    %606 = vst.msk [vmem:[%s564 + $0x148] sm:$0xff] %vm263, %v559
    %607 = vst [vmem:[%s564 + $0x150] sm:$0xff] %v560
    %608 = vst.msk [vmem:[%s564 + $0x158] sm:$0xff] %vm263, %v561
    %609 = vst [vmem:[%s564 + $0x160] sm:$0xf] %v562
    %610 = vst.msk [vmem:[%s564 + $0x168] sm:$0xf] %vm308, %v563
    %s611 = scalar_lea.vmem %s0, 184
    %v612 = vld [vmem:[%s611] sm:$0xf]
    %v613 = vld [vmem:[%s611 + $0x4] sm:$0xf]
    %v614 = vld [vmem:[%s611 + $0x8] sm:$0xf]
    %v615 = vld [vmem:[%s611 + $0xc] sm:$0xf]
    %v616 = vld [vmem:[%s611 + $0x10] sm:$0xf]
    %v617 = vld [vmem:[%s611 + $0x14] sm:$0xf]
    %v618 = vld [vmem:[%s611 + $0x18] sm:$0xf]
    %v619 = vld [vmem:[%s611 + $0x1c] sm:$0xf]
    %v620 = vld [vmem:[%s611 + $0x20] sm:$0xf]
    %v621 = vld [vmem:[%s611 + $0x24] sm:$0xf]
    %v622 = vld [vmem:[%s611 + $0x28] sm:$0xf]
    %v623 = vld [vmem:[%s611 + $0x2c] sm:$0xf]
    %v624 = vld [vmem:[%s611 + $0x30] sm:$0xf]
    %v625 = vld [vmem:[%s611 + $0x34] sm:$0xf]
    %v626 = vld [vmem:[%s611 + $0x38] sm:$0xf]
    %v627 = vld [vmem:[%s611 + $0x3c] sm:$0xf]
    %v628 = vld [vmem:[%s611 + $0x40] sm:$0xf]
    %v629 = vld [vmem:[%s611 + $0x44] sm:$0xf]
    %v630 = vld [vmem:[%s611 + $0x48] sm:$0xf]
    %v631 = vld [vmem:[%s611 + $0x4c] sm:$0xf]
    %v632 = vld [vmem:[%s611 + $0x50] sm:$0xf]
    %v633 = vld [vmem:[%s611 + $0x54] sm:$0xf]
    %v634 = vld [vmem:[%s611 + $0x58] sm:$0x5]
    %v635 = vunpack.c.0.s8 %v612
    %v636 = vunpack.c.1.s8 %v612
    %v637 = vunpack.c.0.s8 %v613
    %v638 = vunpack.c.1.s8 %v613
    %v639 = vunpack.c.0.s8 %v614
    %v640 = vunpack.c.1.s8 %v614
    %v641 = vunpack.c.0.s8 %v615
    %v642 = vunpack.c.1.s8 %v615
    %v643 = vunpack.c.0.s8 %v616
    %v644 = vunpack.c.1.s8 %v616
    %v645 = vunpack.c.0.s8 %v617
    %v646 = vunpack.c.1.s8 %v617
    %v647 = vunpack.c.0.s8 %v618
    %v648 = vunpack.c.1.s8 %v618
    %v649 = vunpack.c.0.s8 %v619
    %v650 = vunpack.c.1.s8 %v619
    %v651 = vunpack.c.0.s8 %v620
    %v652 = vunpack.c.1.s8 %v620
    %v653 = vunpack.c.0.s8 %v621
    %v654 = vunpack.c.1.s8 %v621
    %v655 = vunpack.c.0.s8 %v622
    %v656 = vunpack.c.1.s8 %v622
    %v657 = vunpack.c.0.s8 %v623
    %v658 = vunpack.c.1.s8 %v623
    %v659 = vunpack.c.0.s8 %v624
    %v660 = vunpack.c.1.s8 %v624
    %v661 = vunpack.c.0.s8 %v625
    %v662 = vunpack.c.1.s8 %v625
    %v663 = vunpack.c.0.s8 %v626
    %v664 = vunpack.c.1.s8 %v626
    %v665 = vunpack.c.0.s8 %v627
    %v666 = vunpack.c.1.s8 %v627
    %v667 = vunpack.c.0.s8 %v628
    %v668 = vunpack.c.1.s8 %v628
    %v669 = vunpack.c.0.s8 %v629
    %v670 = vunpack.c.1.s8 %v629
    %v671 = vunpack.c.0.s8 %v630
    %v672 = vunpack.c.1.s8 %v630
    %v673 = vunpack.c.0.s8 %v631
    %v674 = vunpack.c.1.s8 %v631
    %v675 = vunpack.c.0.s8 %v632
    %v676 = vunpack.c.1.s8 %v632
    %v677 = vunpack.c.0.s8 %v633
    %v678 = vunpack.c.1.s8 %v633
    %v679 = vunpack.c.0.s8 %v634
    %v680 = vunpack.c.1.s8 %v634
    %v681 = vand.u32 %v635, 255
    %v682 = vand.u32 %v636, 255
    %v683 = vand.u32 %v637, 255
    %v684 = vand.u32 %v638, 255
    %v685 = vand.u32 %v639, 255
    %v686 = vand.u32 %v640, 255
    %v687 = vand.u32 %v641, 255
    %v688 = vand.u32 %v642, 255
    %v689 = vand.u32 %v643, 255
    %v690 = vand.u32 %v644, 255
    %v691 = vand.u32 %v645, 255
    %v692 = vand.u32 %v646, 255
    %v693 = vand.u32 %v647, 255
    %v694 = vand.u32 %v648, 255
    %v695 = vand.u32 %v649, 255
    %v696 = vand.u32 %v650, 255
    %v697 = vand.u32 %v651, 255
    %v698 = vand.u32 %v652, 255
    %v699 = vand.u32 %v653, 255
    %v700 = vand.u32 %v654, 255
    %v701 = vand.u32 %v655, 255
    %v702 = vand.u32 %v656, 255
    %v703 = vand.u32 %v657, 255
    %v704 = vand.u32 %v658, 255
    %v705 = vand.u32 %v659, 255
    %v706 = vand.u32 %v660, 255
    %v707 = vand.u32 %v661, 255
    %v708 = vand.u32 %v662, 255
    %v709 = vand.u32 %v663, 255
    %v710 = vand.u32 %v664, 255
    %v711 = vand.u32 %v665, 255
    %v712 = vand.u32 %v666, 255
    %v713 = vand.u32 %v667, 255
    %v714 = vand.u32 %v668, 255
    %v715 = vand.u32 %v669, 255
    %v716 = vand.u32 %v670, 255
    %v717 = vand.u32 %v671, 255
    %v718 = vand.u32 %v672, 255
    %v719 = vand.u32 %v673, 255
    %v720 = vand.u32 %v674, 255
    %v721 = vand.u32 %v675, 255
    %v722 = vand.u32 %v676, 255
    %v723 = vand.u32 %v677, 255
    %v724 = vand.u32 %v678, 255
    %v725 = vand.u32 %v679, 255
    %v726 = vand.u32 %v680, 255
    %v727 = vcvt.s32.f32 %v681
    %v728 = vcvt.s32.f32 %v682
    %v729 = vcvt.s32.f32 %v683
    %v730 = vcvt.s32.f32 %v684
    %v731 = vcvt.s32.f32 %v685
    %v732 = vcvt.s32.f32 %v686
    %v733 = vcvt.s32.f32 %v687
    %v734 = vcvt.s32.f32 %v688
    %v735 = vcvt.s32.f32 %v689
    %v736 = vcvt.s32.f32 %v690
    %v737 = vcvt.s32.f32 %v691
    %v738 = vcvt.s32.f32 %v692
    %v739 = vcvt.s32.f32 %v693
    %v740 = vcvt.s32.f32 %v694
    %v741 = vcvt.s32.f32 %v695
    %v742 = vcvt.s32.f32 %v696
    %v743 = vcvt.s32.f32 %v697
    %v744 = vcvt.s32.f32 %v698
    %v745 = vcvt.s32.f32 %v699
    %v746 = vcvt.s32.f32 %v700
    %v747 = vcvt.s32.f32 %v701
    %v748 = vcvt.s32.f32 %v702
    %v749 = vcvt.s32.f32 %v703
    %v750 = vcvt.s32.f32 %v704
    %v751 = vcvt.s32.f32 %v705
    %v752 = vcvt.s32.f32 %v706
    %v753 = vcvt.s32.f32 %v707
    %v754 = vcvt.s32.f32 %v708
    %v755 = vcvt.s32.f32 %v709
    %v756 = vcvt.s32.f32 %v710
    %v757 = vcvt.s32.f32 %v711
    %v758 = vcvt.s32.f32 %v712
    %v759 = vcvt.s32.f32 %v713
    %v760 = vcvt.s32.f32 %v714
    %v761 = vcvt.s32.f32 %v715
    %v762 = vcvt.s32.f32 %v716
    %v763 = vcvt.s32.f32 %v717
    %v764 = vcvt.s32.f32 %v718
    %v765 = vcvt.s32.f32 %v719
    %v766 = vcvt.s32.f32 %v720
    %v767 = vcvt.s32.f32 %v721
    %v768 = vcvt.s32.f32 %v722
    %v769 = vcvt.s32.f32 %v723
    %v770 = vcvt.s32.f32 %v724
    %v771 = vcvt.s32.f32 %v725
    %v772 = vcvt.s32.f32 %v726
    %v773 = vmul.f32 %v727, 0.014281429
    %v774 = vmul.f32 %v728, 0.014281429
    %v775 = vmul.f32 %v729, 0.014281429
    %v776 = vmul.f32 %v730, 0.014281429
    %v777 = vmul.f32 %v731, 0.014281429
    %v778 = vmul.f32 %v732, 0.014281429
    %v779 = vmul.f32 %v733, 0.014281429
    %v780 = vmul.f32 %v734, 0.014281429
    %v781 = vmul.f32 %v735, 0.014281429
    %v782 = vmul.f32 %v736, 0.014281429
    %v783 = vmul.f32 %v737, 0.014281429
    %v784 = vmul.f32 %v738, 0.014281429
    %v785 = vmul.f32 %v739, 0.014281429
    %v786 = vmul.f32 %v740, 0.014281429
    %v787 = vmul.f32 %v741, 0.014281429
    %v788 = vmul.f32 %v742, 0.014281429
    %v789 = vmul.f32 %v743, 0.014281429
    %v790 = vmul.f32 %v744, 0.014281429
    %v791 = vmul.f32 %v745, 0.014281429
    %v792 = vmul.f32 %v746, 0.014281429
    %v793 = vmul.f32 %v747, 0.014281429
    %v794 = vmul.f32 %v748, 0.014281429
    %v795 = vmul.f32 %v749, 0.014281429
    %v796 = vmul.f32 %v750, 0.014281429
    %v797 = vmul.f32 %v751, 0.014281429
    %v798 = vmul.f32 %v752, 0.014281429
    %v799 = vmul.f32 %v753, 0.014281429
    %v800 = vmul.f32 %v754, 0.014281429
    %v801 = vmul.f32 %v755, 0.014281429
    %v802 = vmul.f32 %v756, 0.014281429
    %v803 = vmul.f32 %v757, 0.014281429
    %v804 = vmul.f32 %v758, 0.014281429
    %v805 = vmul.f32 %v759, 0.014281429
    %v806 = vmul.f32 %v760, 0.014281429
    %v807 = vmul.f32 %v761, 0.014281429
    %v808 = vmul.f32 %v762, 0.014281429
    %v809 = vmul.f32 %v763, 0.014281429
    %v810 = vmul.f32 %v764, 0.014281429
    %v811 = vmul.f32 %v765, 0.014281429
    %v812 = vmul.f32 %v766, 0.014281429
    %v813 = vmul.f32 %v767, 0.014281429
    %v814 = vmul.f32 %v768, 0.014281429
    %v815 = vmul.f32 %v769, 0.014281429
    %v816 = vmul.f32 %v770, 0.014281429
    %v817 = vmul.f32 %v771, 0.014281429
    %v818 = vmul.f32 %v772, 0.014281429
    %v819 = vadd.f32 %v773, -0.6174814
    %v820 = vadd.f32 %v774, -0.6174814
    %v821 = vadd.f32 %v775, -0.6174814
    %v822 = vadd.f32 %v776, -0.6174814
    %v823 = vadd.f32 %v777, -0.6174814
    %v824 = vadd.f32 %v778, -0.6174814
    %v825 = vadd.f32 %v779, -0.6174814
    %v826 = vadd.f32 %v780, -0.6174814
    %v827 = vadd.f32 %v781, -0.6174814
    %v828 = vadd.f32 %v782, -0.6174814
    %v829 = vadd.f32 %v783, -0.6174814
    %v830 = vadd.f32 %v784, -0.6174814
    %v831 = vadd.f32 %v785, -0.6174814
    %v832 = vadd.f32 %v786, -0.6174814
    %v833 = vadd.f32 %v787, -0.6174814
    %v834 = vadd.f32 %v788, -0.6174814
    %v835 = vadd.f32 %v789, -0.6174814
    %v836 = vadd.f32 %v790, -0.6174814
    %v837 = vadd.f32 %v791, -0.6174814
    %v838 = vadd.f32 %v792, -0.6174814
    %v839 = vadd.f32 %v793, -0.6174814
    %v840 = vadd.f32 %v794, -0.6174814
    %v841 = vadd.f32 %v795, -0.6174814
    %v842 = vadd.f32 %v796, -0.6174814
    %v843 = vadd.f32 %v797, -0.6174814
    %v844 = vadd.f32 %v798, -0.6174814
    %v845 = vadd.f32 %v799, -0.6174814
    %v846 = vadd.f32 %v800, -0.6174814
    %v847 = vadd.f32 %v801, -0.6174814
    %v848 = vadd.f32 %v802, -0.6174814
    %v849 = vadd.f32 %v803, -0.6174814
    %v850 = vadd.f32 %v804, -0.6174814
    %v851 = vadd.f32 %v805, -0.6174814
    %v852 = vadd.f32 %v806, -0.6174814
    %v853 = vadd.f32 %v807, -0.6174814
    %v854 = vadd.f32 %v808, -0.6174814
    %v855 = vadd.f32 %v809, -0.6174814
    %v856 = vadd.f32 %v810, -0.6174814
    %v857 = vadd.f32 %v811, -0.6174814
    %v858 = vadd.f32 %v812, -0.6174814
    %v859 = vadd.f32 %v813, -0.6174814
    %v860 = vadd.f32 %v814, -0.6174814
    %v861 = vadd.f32 %v815, -0.6174814
    %v862 = vadd.f32 %v816, -0.6174814
    %v863 = vadd.f32 %v817, -0.6174814
    %v864 = vadd.f32 %v818, -0.6174814
    %s865 = scalar_lea.vmem [#allocation2], 736
    %866 = vst [vmem:[%s865] sm:$0xff] %v819
    %867 = vst.msk [vmem:[%s865 + $0x8] sm:$0xff] %vm263, %v820
    %868 = vst [vmem:[%s865 + $0x10] sm:$0xff] %v821
    %869 = vst.msk [vmem:[%s865 + $0x18] sm:$0xff] %vm263, %v822
    %870 = vst [vmem:[%s865 + $0x20] sm:$0xff] %v823
    %871 = vst.msk [vmem:[%s865 + $0x28] sm:$0xff] %vm263, %v824
    %872 = vst [vmem:[%s865 + $0x30] sm:$0xff] %v825
    %873 = vst.msk [vmem:[%s865 + $0x38] sm:$0xff] %vm263, %v826
    %874 = vst [vmem:[%s865 + $0x40] sm:$0xff] %v827
    %875 = vst.msk [vmem:[%s865 + $0x48] sm:$0xff] %vm263, %v828
    %876 = vst [vmem:[%s865 + $0x50] sm:$0xff] %v829
    %877 = vst.msk [vmem:[%s865 + $0x58] sm:$0xff] %vm263, %v830
    %878 = vst [vmem:[%s865 + $0x60] sm:$0xff] %v831
    %879 = vst.msk [vmem:[%s865 + $0x68] sm:$0xff] %vm263, %v832
    %880 = vst [vmem:[%s865 + $0x70] sm:$0xff] %v833
    %881 = vst.msk [vmem:[%s865 + $0x78] sm:$0xff] %vm263, %v834
    %882 = vst [vmem:[%s865 + $0x80] sm:$0xff] %v835
    %883 = vst.msk [vmem:[%s865 + $0x88] sm:$0xff] %vm263, %v836
    %884 = vst [vmem:[%s865 + $0x90] sm:$0xff] %v837
    %885 = vst.msk [vmem:[%s865 + $0x98] sm:$0xff] %vm263, %v838
    %886 = vst [vmem:[%s865 + $0xa0] sm:$0xff] %v839
    %887 = vst.msk [vmem:[%s865 + $0xa8] sm:$0xff] %vm263, %v840
    %888 = vst [vmem:[%s865 + $0xb0] sm:$0xff] %v841
    %889 = vst.msk [vmem:[%s865 + $0xb8] sm:$0xff] %vm263, %v842
    %890 = vst [vmem:[%s865 + $0xc0] sm:$0xff] %v843
    %891 = vst.msk [vmem:[%s865 + $0xc8] sm:$0xff] %vm263, %v844
    %892 = vst [vmem:[%s865 + $0xd0] sm:$0xff] %v845
    %893 = vst.msk [vmem:[%s865 + $0xd8] sm:$0xff] %vm263, %v846
    %894 = vst [vmem:[%s865 + $0xe0] sm:$0xff] %v847
    %895 = vst.msk [vmem:[%s865 + $0xe8] sm:$0xff] %vm263, %v848
    %896 = vst [vmem:[%s865 + $0xf0] sm:$0xff] %v849
    %897 = vst.msk [vmem:[%s865 + $0xf8] sm:$0xff] %vm263, %v850
    %898 = vst [vmem:[%s865 + $0x100] sm:$0xff] %v851
    %899 = vst.msk [vmem:[%s865 + $0x108] sm:$0xff] %vm263, %v852
    %900 = vst [vmem:[%s865 + $0x110] sm:$0xff] %v853
    %901 = vst.msk [vmem:[%s865 + $0x118] sm:$0xff] %vm263, %v854
    %902 = vst [vmem:[%s865 + $0x120] sm:$0xff] %v855
    %903 = vst.msk [vmem:[%s865 + $0x128] sm:$0xff] %vm263, %v856
    %904 = vst [vmem:[%s865 + $0x130] sm:$0xff] %v857
    %905 = vst.msk [vmem:[%s865 + $0x138] sm:$0xff] %vm263, %v858
    %906 = vst [vmem:[%s865 + $0x140] sm:$0xff] %v859
    %907 = vst.msk [vmem:[%s865 + $0x148] sm:$0xff] %vm263, %v860
    %908 = vst [vmem:[%s865 + $0x150] sm:$0xff] %v861
    %909 = vst.msk [vmem:[%s865 + $0x158] sm:$0xff] %vm263, %v862
    %910 = vst [vmem:[%s865 + $0x160] sm:$0xf] %v863
    %911 = vst.msk [vmem:[%s865 + $0x168] sm:$0xf] %vm308, %v864
    // Predicated region
    $region6: #{preprocess.1} parent=1 // pred_check
      _
    $region7: #{preprocess.1} parent=1 // pred_check_branch
      %913 = sbr.rel (0) target = $region9
    $region8: #{preprocess.1} parent=1 // pred_region
      %s915 = ssub.s32 17664, 17664
      %916 = vsyncadd [#allocation3], %s915
      %s917 = sshll.u32 [#allocation2], 4
      %s918 = int_to_ptr.vmem [resolvable:$true] %s917
      %923 = dma.vmem_to_hbm [thread:$0]  %s918, 17664, %s1, [#allocation3], 256, 256, 16
    $region9: #{preprocess.1} parent=1 // pred_fallthru
      _
    // Predicated region
    $region10: #{preprocess.1} parent=1 // pred_check
      _
    $region11: #{preprocess.1} parent=1 // pred_check_branch
      %925 = sbr.rel (0) target = $region13
    $region12: #{preprocess.1} parent=1 // pred_region
      %926 = dma.done [#allocation3], 17664
    $region13: #{preprocess.1} parent=1 // pred_fallthru
      _
    %927 = vsyncpa [#allocation3], 1

</llo_original>
